<compile_context>
chip_gen: v5e
topology: v5e:2x2
jax: 0.10.0
libtpu: 0.0.40
codegen_flags: <defaults>
</compile_context>

<pallas_src>
import jax
import jax.numpy as jnp
from jax.experimental import pallas as pl
from jax.experimental.pallas import tpu as pltpu


def _round_up(x, m):
    return ((x + m - 1) // m) * m


def _choose_tiling(M, tm_max=4096, min_tiles=2):
    """Pick (TM, M_pad) with M_pad = round_up(M, 128) and TM a multiple of 128
    that divides M_pad exactly.  Tries to give >= min_tiles grid steps (so the
    'parallel' axis actually shards across v7x's two TensorCores) while keeping
    TM <= tm_max.  Padding waste is always < 128 columns."""
    M_pad = _round_up(max(M, 1), 128)
    units = M_pad // 128
    if units == 1:
        return 128, M_pad
    want = max(min_tiles, -(-M_pad // tm_max))   # ceil div
    want = min(want, units)
    for t in range(want, units + 1):
        if units % t == 0:
            return (units // t) * 128, M_pad
    return 128, M_pad


# ----------------------------------------------------------------------------
# Pallas kernel: two MXU matmuls per M-tile against resident f32 W and G.
#   w_ref  : (V_pad, K_pad) f32, resident across the M grid
#   g_ref  : (K_pad, K_pad) f32 (= W^T W, padded), resident
#   p_ref  : (K_pad, TM)    patch tile (bf16), M on the lane axis
#   cm_ref : (V_pad, TM)    cm^T tile
#   rec_ref: (K_pad, TM)    rec^T tile
# ----------------------------------------------------------------------------
def _compose_reconstruct_kernel(w_ref, g_ref, p_ref, cm_ref, rec_ref):
    p = p_ref[...].astype(jnp.float32)
    cm_ref[...] = jnp.dot(w_ref[...], p,
                          preferred_element_type=jnp.float32).astype(cm_ref.dtype)
    rec_ref[...] = jnp.dot(g_ref[...], p,
                           preferred_element_type=jnp.float32).astype(rec_ref.dtype)


def layer_compose_reconstruct(p_kt, w_pad, g_pad, *, compute_dtype=jnp.bfloat16,
                              tm_max=4096, min_m_tiles=2):
    """p_kt: (K, M) patches with M = B*N on the lane axis.
    w_pad: (V_pad, K_pad) f32, g_pad: (K_pad, K_pad) f32 (zero padded).

    Returns (cm_t_pad (V_pad, M_pad), rec_t_pad (K_pad, M_pad)) in compute_dtype:
      cm_t  = W @ P^T   (composition matrix, transposed)
      rec_t = (W^T W) @ P^T = (cm @ W)^T   (reconstructed patches, transposed)
    """
    K, M = p_kt.shape
    V_pad, K_pad = w_pad.shape
    assert g_pad.shape == (K_pad, K_pad)
    assert K <= K_pad

    TM, M_pad = _choose_tiling(M, tm_max, min_m_tiles)

    # Pad rows to K_pad (zeros contribute nothing to the contraction) and
    # columns to M_pad; cast the dominant stream to bf16 (halves HBM bytes).
    p = jnp.pad(p_kt.astype(compute_dtype), ((0, K_pad - K), (0, M_pad - M)))

    # VMEM footprint per step (double-buffered) is well under the scoped
    # default on all generations at these K/V sizes, so no vmem_limit_bytes.
    cm_t_pad, rec_t_pad = pl.pallas_call(
        _compose_reconstruct_kernel,
        out_shape=(jax.ShapeDtypeStruct((V_pad, M_pad), compute_dtype),
                   jax.ShapeDtypeStruct((K_pad, M_pad), compute_dtype)),
        grid=(M_pad // TM,),
        in_specs=[pl.BlockSpec((V_pad, K_pad), lambda i: (0, 0)),   # resident W
                  pl.BlockSpec((K_pad, K_pad), lambda i: (0, 0)),   # resident G
                  pl.BlockSpec((K_pad, TM), lambda i: (0, i))],     # patch tile
        out_specs=(pl.BlockSpec((V_pad, TM), lambda i: (0, i)),
                   pl.BlockSpec((K_pad, TM), lambda i: (0, i))),
        compiler_params=pltpu.CompilerParams(
            dimension_semantics=("parallel",)),   # M tiles independent
    )(w_pad, g_pad, p)
    return cm_t_pad, rec_t_pad


# ----------------------------------------------------------------------------
# Layout glue: non-overlapping unfold / fold (stride == patch_size) as pure
# reshape/transpose, producing / consuming the (K, M) lane-major layout.
# ----------------------------------------------------------------------------
def extract_patches_kt(featmap_bchw, patch_size=3, stride=3):
    """(B, C, H, W) -> (K, M), K = C*ph*pw (F.unfold ordering), M = B*N."""
    assert stride == patch_size, "non-overlapping patches only"
    B, C, H, W = featmap_bchw.shape
    Ho, Wo = H // patch_size, W // patch_size
    x = featmap_bchw.reshape(B, C, Ho, patch_size, Wo, patch_size)
    x = jnp.transpose(x, (1, 3, 5, 0, 2, 4))            # (C, ph, pw, B, Ho, Wo)
    return x.reshape(C * patch_size * patch_size, B * Ho * Wo)


def _cm_t_to_next_p_kt(cm_t, V, B, Ho, Wo, patch_size):
    """(V, B*Ho*Wo) -> next layer (V*ph*pw, B*Ho2*Wo2) in one transpose
    (skips the BCHW featmap round trip on the compute path)."""
    Ho2, Wo2 = Ho // patch_size, Wo // patch_size
    x = cm_t.reshape(V, B, Ho2, patch_size, Wo2, patch_size)
    x = jnp.transpose(x, (0, 3, 5, 1, 2, 4))            # (V, ph, pw, B, Ho2, Wo2)
    return x.reshape(V * patch_size * patch_size, B * Ho2 * Wo2)


def fold_patches_kt(rec_kt, B, C, out_h, out_w, patch_size=3, stride=3):
    """(K, M) = (C*ph*pw, B*N) -> (B, C, out_h, out_w)."""
    assert stride == patch_size, "non-overlapping fold only"
    Ho, Wo = out_h // patch_size, out_w // patch_size
    x = rec_kt.reshape(C, patch_size, patch_size, B, Ho, Wo)
    x = jnp.transpose(x, (3, 0, 4, 1, 5, 2))            # (B, C, Ho, ph, Wo, pw)
    return x.reshape(B, C, out_h, out_w)


# Standard-layout helpers (used only by the pure-JAX reference check).
def extract_patches(featmap_bchw, patch_size=3, stride=3):
    assert stride == patch_size
    B, C, H, W = featmap_bchw.shape
    Ho, Wo = H // patch_size, W // patch_size
    x = featmap_bchw.reshape(B, C, Ho, patch_size, Wo, patch_size)
    x = jnp.transpose(x, (0, 2, 4, 1, 3, 5))            # (B, Ho, Wo, C, ph, pw)
    return x.reshape(B, Ho * Wo, C, patch_size, patch_size)


def fold_patches(patches, out_h, out_w, patch_size=3, stride=3):
    assert stride == patch_size
    B, N, C, ph, pw = patches.shape
    Ho, Wo = out_h // patch_size, out_w // patch_size
    x = patches.reshape(B, Ho, Wo, C, ph, pw)
    x = jnp.transpose(x, (0, 3, 1, 4, 2, 5))            # (B, C, Ho, ph, Wo, pw)
    return x.reshape(B, C, out_h, out_w)


# ----------------------------------------------------------------------------
# Pipeline
# ----------------------------------------------------------------------------
class CompositionalPipeline:
    def __init__(self, in_channels=1, vocab_sizes=(10, 5), patch_size=3,
                 stride=3, image_size=9, key=None,
                 compute_dtype=jnp.bfloat16, tm_max=4096):
        self.in_channels = in_channels
        self.vocab_sizes = list(vocab_sizes)
        self.patch_size = patch_size
        self.stride = stride
        self.image_size = image_size
        self.compute_dtype = compute_dtype
        self.tm_max = tm_max

        # Deterministic "vocabulary" parameters: (vocab_size, in_channels, ph, pw)
        # plus the per-layer padded W and G = W^T W, precomputed once here
        # (not per forward call).
        self.vocabularies = []
        self._w_pad = []
        self._g_pad = []
        key = jax.random.PRNGKey(0) if key is None else key
        cur_c = in_channels
        for vs in self.vocab_sizes:
            key, sub = jax.random.split(key)
            vocab = 0.1 * jax.random.normal(
                sub, (vs, cur_c, patch_size, patch_size), dtype=jnp.float32)
            self.vocabularies.append(vocab)

            K = cur_c * patch_size * patch_size
            V_pad = _round_up(vs, 16)      # bf16 sublane-friendly padding
            K_pad = _round_up(K, 16)
            w_flat = vocab.reshape(vs, K)
            G = jnp.dot(w_flat.T, w_flat, precision=jax.lax.Precision.HIGHEST)
            w_pad = jnp.zeros((V_pad, K_pad), jnp.float32).at[:vs, :K].set(w_flat)
            g_pad = jnp.zeros((K_pad, K_pad), jnp.float32).at[:K, :K].set(G)
            self._w_pad.append(w_pad)
            self._g_pad.append(g_pad)
            cur_c = vs

    def forward(self, images):
        final_feat, info_list = self.compose(images)
        reconstructed = self.reconstruct(info_list)
        return final_feat, info_list, reconstructed

    def compose(self, images):
        B, C, H, W = images.shape
        assert H == self.image_size and W == self.image_size, \
            'Input image size must match self.image_size.'
        ps, st = self.patch_size, self.stride
        n_layers = len(self.vocab_sizes)

        info_list = []
        featmap_bchw = images.astype(jnp.float32)
        p_kt = extract_patches_kt(featmap_bchw, ps, st)          # (K0, M0)
        cm = None
        for i in range(n_layers):
            in_ch = self.in_channels if i == 0 else self.vocab_sizes[i - 1]
            V = self.vocab_sizes[i]
            Ho, Wo = H // st, W // st
            N = Ho * Wo
            M = B * N
            K = in_ch * ps * ps

            cm_t_pad, rec_t_pad = layer_compose_reconstruct(
                p_kt, self._w_pad[i], self._g_pad[i],
                compute_dtype=self.compute_dtype, tm_max=self.tm_max)

            cm_t = cm_t_pad[:V, :M]                              # (V, M)
            cm = jnp.transpose(cm_t.reshape(V, B, N), (1, 2, 0))  # (B, N, V)

            info = {
                'featmap_bchw': featmap_bchw,
                'layer_idx': i,
                'patches_shape': (B, N, in_ch, ps, ps),
                'in_featmap_shape': (B, in_ch, H, W),
                'out_featmap_shape': (B, V, Ho, Wo),
                'composition_matrix': cm,
                # fused reconstruction (cm @ vocab), (C*ph*pw, B*N) layout
                '_rec_kt': rec_t_pad[:K, :M],
            }
            info_list.append(info)

            if i + 1 < n_layers:
                # info-only BCHW featmap for the next layer; the compute path
                # goes straight from cm_t to the next patch stream.
                featmap_bchw = jnp.transpose(cm_t.reshape(V, B, Ho, Wo),
                                             (1, 0, 2, 3))
                p_kt = _cm_t_to_next_p_kt(cm_t, V, B, Ho, Wo, ps)
            H, W = Ho, Wo

        final_featmap = cm.reshape(B, H, W, self.vocab_sizes[-1])
        return final_featmap, info_list

    def reconstruct(self, info_list):
        reconstructed_info = [None] * len(self.vocab_sizes)
        for i in reversed(range(len(self.vocab_sizes))):
            info = info_list[i]
            B, in_ch, H_in, W_in = info['in_featmap_shape']
            reconstructed_info[i] = fold_patches_kt(
                info['_rec_kt'], B, in_ch, H_in, W_in,
                self.patch_size, self.stride)
        return reconstructed_info


# ----------------------------------------------------------------------------
# Pure-JAX reference pipeline (unfused, f32, standard layout) for correctness.
# ----------------------------------------------------------------------------
def _ref_pipeline(images, vocabularies, patch_size, stride):
    B, C, H, W = images.shape
    featmap = images.astype(jnp.float32)
    cms, recs = [], []
    hi = jax.lax.Precision.HIGHEST
    for vocab in vocabularies:
        in_ch = featmap.shape[1]
        patches = extract_patches(featmap, patch_size, stride)   # (B,N,C,ph,pw)
        _, N, _, ph, pw = patches.shape
        V = vocab.shape[0]
        p = patches.reshape(B * N, in_ch * ph * pw)
        w = vocab.reshape(V, in_ch * ph * pw)
        cm = jnp.dot(p, w.T, precision=hi)                       # (B*N, V)
        rec = jnp.dot(cm, w, precision=hi)                       # (B*N, K)
        cms.append(cm.reshape(B, N, V))
        recs.append(fold_patches(rec.reshape(B, N, in_ch, ph, pw),
                                 H, W, patch_size, stride))
        H_out, W_out = H // stride, W // stride
        featmap = jnp.transpose(cm.reshape(B, H_out, W_out, V), (0, 3, 1, 2))
        H, W = H_out, W_out
    final = jnp.transpose(featmap, (0, 2, 3, 1))
    return final, cms, recs


if __name__ == "__main__":
    key = jax.random.PRNGKey(0)
    k_img, k_params = jax.random.split(key)

    B, in_channels, image_size = 2, 1, 9          # 9 -> 3 -> 1 over 2 layers
    vocab_sizes = [10, 5]
    images = jax.random.normal(k_img, (B, in_channels, image_size, image_size),
                               dtype=jnp.float32)

    pipe = CompositionalPipeline(in_channels=in_channels,
                                 vocab_sizes=vocab_sizes,
                                 patch_size=3, stride=3,
                                 image_size=image_size, key=k_params,
                                 compute_dtype=jnp.bfloat16)

    final_feat, info_list, reconstructed = pipe.forward(images)
    jax.block_until_ready(final_feat)
    for r in reconstructed:
        jax.block_until_ready(r)

    # end-to-end correctness vs pure-JAX f32 reference (bf16 patch stream ->
    # looser tolerance than the previous all-f32 version)
    final_ref, cm_refs, rec_refs = _ref_pipeline(images, pipe.vocabularies, 3, 3)
    atol = rtol = 2e-2
    assert jnp.allclose(final_feat.astype(jnp.float32), final_ref,
                        atol=atol, rtol=rtol)
    for i in range(len(vocab_sizes)):
        assert jnp.allclose(info_list[i]['composition_matrix'].astype(jnp.float32),
                            cm_refs[i], atol=atol, rtol=rtol)
        assert jnp.allclose(reconstructed[i].astype(jnp.float32),
                            rec_refs[i], atol=atol, rtol=rtol)

    # shape checks mirroring the PyTorch module
    assert final_feat.shape == (B, 1, 1, vocab_sizes[-1])
    assert reconstructed[0].shape == (B, in_channels, image_size, image_size)
    assert reconstructed[1].shape == (B, vocab_sizes[0], 3, 3)

    print("KERNEL_OK")
</pallas_src>

<mosaic_0001>
module attributes {stable_mosaic.version = 11 : i64} {
  func.func @_compose_reconstruct_kernel(%arg0: i32, %arg1: memref<16x16xf32, #tpu.memory_space<vmem>>, %arg2: memref<16x16xf32, #tpu.memory_space<vmem>>, %arg3: memref<16x128xbf16, #tpu.memory_space<vmem>>, %arg4: memref<16x128xbf16, #tpu.memory_space<vmem>>, %arg5: memref<16x128xbf16, #tpu.memory_space<vmem>>) attributes {dimension_semantics = [#tpu.dimension_semantics<parallel>], iteration_bounds = array<i64: 1>, scalar_prefetch = 0 : i64, scratch_operands = 0 : i64, tpu.core_type = #tpu.core_type<tc>, window_params = [{pipeline_mode = #tpu.pipeline_mode<synchronous>, transform_indices = @transform_0, window_bounds = array<i64: 16, 16>}, {pipeline_mode = #tpu.pipeline_mode<synchronous>, transform_indices = @transform_1, window_bounds = array<i64: 16, 16>}, {transform_indices = @transform_2, window_bounds = array<i64: 16, 128>}, {transform_indices = @transform_3, window_bounds = array<i64: 16, 128>}, {transform_indices = @transform_4, window_bounds = array<i64: 16, 128>}]} {
    %c0 = arith.constant 0 : index
    %c0_0 = arith.constant 0 : index
    %0 = vector.load %arg3[%c0, %c0_0] : memref<16x128xbf16, #tpu.memory_space<vmem>>, vector<16x128xbf16>
    %1 = arith.extf %0 : vector<16x128xbf16> to vector<16x128xf32>
    %c0_1 = arith.constant 0 : index
    %c0_2 = arith.constant 0 : index
    %2 = vector.load %arg1[%c0_1, %c0_2] : memref<16x16xf32, #tpu.memory_space<vmem>>, vector<16x16xf32>
    %cst = arith.constant dense<0.000000e+00> : vector<16x128xf32>
    %3 = tpu.matmul %2, %1, %cst {dimension_numbers = #tpu.dot_dimension_numbers<[1], [0], [0], [1], [0, 0, 1, 1], [], []>} : vector<16x16xf32>, vector<16x128xf32>, vector<16x128xf32> -> vector<16x128xf32>
    %4 = arith.truncf %3 : vector<16x128xf32> to vector<16x128xbf16>
    %c0_3 = arith.constant 0 : index
    %c0_4 = arith.constant 0 : index
    %5 = vector.load %arg4[%c0_3, %c0_4] : memref<16x128xbf16, #tpu.memory_space<vmem>>, vector<16x128xbf16>
    tpu.vector_store %arg4[%c0_3, %c0_4], %4 {strides = array<i32>} : memref<16x128xbf16, #tpu.memory_space<vmem>>, vector<16x128xbf16>,
    %c0_5 = arith.constant 0 : index
    %c0_6 = arith.constant 0 : index
    %6 = vector.load %arg2[%c0_5, %c0_6] : memref<16x16xf32, #tpu.memory_space<vmem>>, vector<16x16xf32>
    %cst_7 = arith.constant dense<0.000000e+00> : vector<16x128xf32>
    %7 = tpu.matmul %6, %1, %cst_7 {dimension_numbers = #tpu.dot_dimension_numbers<[1], [0], [0], [1], [0, 0, 1, 1], [], []>} : vector<16x16xf32>, vector<16x128xf32>, vector<16x128xf32> -> vector<16x128xf32>
    %8 = arith.truncf %7 : vector<16x128xf32> to vector<16x128xbf16>
    %c0_8 = arith.constant 0 : index
    %c0_9 = arith.constant 0 : index
    %9 = vector.load %arg5[%c0_8, %c0_9] : memref<16x128xbf16, #tpu.memory_space<vmem>>, vector<16x128xbf16>
    tpu.vector_store %arg5[%c0_8, %c0_9], %8 {strides = array<i32>} : memref<16x128xbf16, #tpu.memory_space<vmem>>, vector<16x128xbf16>,
    return
  }
  func.func @transform_0(%arg0: i32) -> (i32, i32) {
    %c0_i32 = arith.constant 0 : i32
    %c0_i32_0 = arith.constant 0 : i32
    %c0_i32_1 = arith.constant 0 : i32
    return %c0_i32, %c0_i32_0 : i32, i32
  }
  func.func @transform_1(%arg0: i32) -> (i32, i32) {
    %c0_i32 = arith.constant 0 : i32
    %c0_i32_0 = arith.constant 0 : i32
    %c0_i32_1 = arith.constant 0 : i32
    return %c0_i32, %c0_i32_0 : i32, i32
  }
  func.func @transform_2(%arg0: i32) -> (i32, i32) {
    %c0_i32 = arith.constant 0 : i32
    %c0_i32_0 = arith.constant 0 : i32
    return %c0_i32, %arg0 : i32, i32
  }
  func.func @transform_3(%arg0: i32) -> (i32, i32) {
    %c0_i32 = arith.constant 0 : i32
    %c0_i32_0 = arith.constant 0 : i32
    return %c0_i32, %arg0 : i32, i32
  }
  func.func @transform_4(%arg0: i32) -> (i32, i32) {
    %c0_i32 = arith.constant 0 : i32
    %c0_i32_0 = arith.constant 0 : i32
    return %c0_i32, %arg0 : i32, i32
  }
}

</mosaic_0001>

<llo_original>
// kernel: tpu_custom_call.1
$region0: #{tpu_custom_call.1}
  #allocation0 [shape = 'u32[]', space=smem, size = 0x4, offset = 0x4, fixed_abs, tag = 'smem constant byte address 0x4 - core index']
  #allocation1 [shape = 'u32[72,128]{1,0:T(1,128)}', space=vmem, size = 0x9000, scoped, tag = 'internal scratch']
  %s0 = inlined_call_operand.hbm [shape: f32[16,16], index: 0, kind: input, shape index: {}]
  %s1 = inlined_call_operand.hbm [shape: f32[16,16], index: 1, kind: input, shape index: {}]
  %s2 = inlined_call_operand.hbm [shape: bf16[16,128], index: 2, kind: input, shape index: {}]
  %s3 = inlined_call_operand.hbm [shape: bf16[16,128], index: 3, kind: output, shape index: {0}]
  %s4 = inlined_call_operand.hbm [shape: bf16[16,128], index: 4, kind: output, shape index: {1}]
  %5 = xla_tuple %s3, %s4
  %s6 = sld [smem:[#allocation0]]
  $region42: #{tpu_custom_call.1} parent=0
    _
  %s8 = ssub.s32 1, %s6
  %s9 = scalar_select 0, %s8, %s6
  $region1: #{tpu_custom_call.1} parent=0
    #allocation2 [shape = 'u8[8192]{0}', space=vmem, size = 0x2000, scoped, tag = 'input window, operand 0, single buffered']
    #allocation3 [shape = 's32[1]{0}', space=sflag, size = 0x4, scoped, tag = 'scoped memory for tpu_custom_call.1']
    #allocation4 [shape = 's32[1]{0}', space=sflag, size = 0x4, scoped, tag = 'scoped memory for tpu_custom_call.1']
    #allocation5 [shape = 'u8[8192]{0}', space=vmem, size = 0x2000, scoped, tag = 'input window, operand 1, single buffered']
    #allocation6 [shape = 's32[1]{0}', space=sflag, size = 0x4, scoped, tag = 'scoped memory for tpu_custom_call.1']
    #allocation7 [shape = 'u8[4096]{0}', space=vmem, size = 0x1000, scoped, tag = 'input window, operand 2, single buffered']
    #allocation8 [shape = 'u8[4096]{0}', space=vmem, size = 0x1000, scoped, tag = 'output window, operand 0, single buffered']
    #allocation9 [shape = 'u8[4096]{0}', space=vmem, size = 0x1000, scoped, tag = 'output window, operand 1, single buffered']
    #allocation10 [shape = 's32[1]{0}', space=sflag, size = 0x4, scoped, tag = 'scoped memory for tpu_custom_call.1']
    %10 = vsyncpa [#allocation3], 0
    %11 = vsyncpa [#allocation6], 0
    %12 = vsyncpa [#allocation4], 0
    %13 = vsyncpa [#allocation10], 0
    // Predicated region
    $region2: #{tpu_custom_call.1} parent=1 // pred_check
      _
    $region3: #{tpu_custom_call.1} parent=1 // pred_check_branch
      %15 = sbr.rel (0) target = $region5
    $region4: #{tpu_custom_call.1} parent=1 // pred_region
      %17 = vsyncadd [#allocation3], 0
      %s18 = sshll.u32 %s0, 4
      %s19 = int_to_ptr.hbm [resolvable:$true] %s18
      %s20 = sshll.u32 [#allocation2], 4
      %s21 = int_to_ptr.vmem [resolvable:$true] %s20
      %26 = dma.hbm_to_vmem [thread:$0]  %s19, 256, %s21, [#allocation3], 128, 128, 8
    $region5: #{tpu_custom_call.1} parent=1 // pred_fallthru
      _
    // Predicated region
    $region6: #{tpu_custom_call.1} parent=1 // pred_check
      _
    $region7: #{tpu_custom_call.1} parent=1 // pred_check_branch
      %28 = sbr.rel (0) target = $region9
    $region8: #{tpu_custom_call.1} parent=1 // pred_region
      %30 = vsyncadd [#allocation6], 0
      %s31 = sshll.u32 %s1, 4
      %s32 = int_to_ptr.hbm [resolvable:$true] %s31
      %s33 = sshll.u32 [#allocation5], 4
      %s34 = int_to_ptr.vmem [resolvable:$true] %s33
      %39 = dma.hbm_to_vmem [thread:$0]  %s32, 256, %s34, [#allocation6], 128, 128, 8
    $region9: #{tpu_custom_call.1} parent=1 // pred_fallthru
      _
    // Predicated region
    $region10: #{tpu_custom_call.1} parent=1 // pred_check
      _
    $region11: #{tpu_custom_call.1} parent=1 // pred_check_branch
      %41 = sbr.rel (0) target = $region13
    $region12: #{tpu_custom_call.1} parent=1 // pred_region
      %43 = vsyncadd [#allocation6], 0
      %s44 = sshll.u32 %s2, 4
      %s45 = int_to_ptr.hbm [resolvable:$true] %s44
      %s46 = sshll.u32 [#allocation7], 4
      %s47 = int_to_ptr.vmem [resolvable:$true] %s46
      %52 = dma.hbm_to_vmem [thread:$0]  %s45, 128, %s47, [#allocation6], 64, 64, 4
    $region13: #{tpu_custom_call.1} parent=1 // pred_fallthru
      _
    // Predicated region
    $region14: #{tpu_custom_call.1} parent=1 // pred_check
      _
    $region15: #{tpu_custom_call.1} parent=1 // pred_check_branch
      %54 = sbr.rel (0) target = $region17
    $region16: #{tpu_custom_call.1} parent=1 // pred_region
      %56 = dma.done [#allocation3], 256
    $region17: #{tpu_custom_call.1} parent=1 // pred_fallthru
      _
    // Predicated region
    $region18: #{tpu_custom_call.1} parent=1 // pred_check
      _
    $region19: #{tpu_custom_call.1} parent=1 // pred_check_branch
      %58 = sbr.rel (0) target = $region21
    $region20: #{tpu_custom_call.1} parent=1 // pred_region
      %60 = dma.done [#allocation6], 256
    $region21: #{tpu_custom_call.1} parent=1 // pred_fallthru
      _
    // Predicated region
    $region22: #{tpu_custom_call.1} parent=1 // pred_check
      _
    $region23: #{tpu_custom_call.1} parent=1 // pred_check_branch
      %62 = sbr.rel (0) target = $region25
    $region24: #{tpu_custom_call.1} parent=1 // pred_region
      %64 = dma.done [#allocation6], 128
    $region25: #{tpu_custom_call.1} parent=1 // pred_fallthru
      _
    %v65 = vld [vmem:[#allocation7] sm:$0xf]
    %v66 = vld [vmem:[#allocation7 + $0x4] sm:$0xf]
    %v67 = vunpack.c.l.bf16 %v65
    %v68 = vunpack.c.l.bf16 %v66
    %v69 = vld [vmem:[#allocation2] sm:$0xff]
    %v70 = vld [vmem:[#allocation2 + $0x8] sm:$0xff]
    %vm71 = vcmask 130048
    %v73 = vsel %vm71, %v69, 0
    %v76 = vsel %vm71, %v70, 0
    %78 = vmatpush.msra.mxu0 0.0
    %79 = vmatpush.msra.mxu0 0.0
    %80 = vmatpush.msra.mxu0 0.0
    %81 = vmatpush.msra.mxu0 0.0
    %82 = vmatpush.msra.mxu0 0.0
    %83 = vmatpush.msra.mxu0 0.0
    %84 = vmatpush.msra.mxu0 0.0
    %85 = vmatpush.msra.mxu0 0.0
    %86 = vmatpush.msra.mxu0 0.0
    %87 = vmatpush.msra.mxu0 0.0
    %88 = vmatpush.msra.mxu0 0.0
    %89 = vmatpush.msra.mxu0 0.0
    %90 = vmatpush.msra.mxu0 0.0
    %91 = vmatpush.msra.mxu0 0.0
    %92 = vmatpush.msra.mxu0 %v68
    %93 = vmatpush.msra.mxu0 %v67
    %94 = vmatmul.f32.gmra.mxu0 %v73
    %v95 = vpop.f32.mrf.mxu0
    %v96 = vadd.f32 0.0, %v95
    %97 = vmatmul.f32.gmra.mxu0 %v76
    %v98 = vpop.f32.mrf.mxu0
    %v99 = vadd.f32 0.0, %v98
    %100 = vdwg.mxu0
    %v101 = vpack.c.bf16 %v96, %v96
    %v102 = vpack.c.bf16 %v99, %v99
    %103 = vst [vmem:[#allocation8] sm:$0xf] %v101
    %104 = vst [vmem:[#allocation8 + $0x4] sm:$0xf] %v102
    %v105 = vld [vmem:[#allocation5] sm:$0xff]
    %v106 = vld [vmem:[#allocation5 + $0x8] sm:$0xff]
    %v108 = vsel %vm71, %v105, 0
    %v111 = vsel %vm71, %v106, 0
    %113 = vmatpush.msra.mxu0 0.0
    %114 = vmatpush.msra.mxu0 0.0
    %115 = vmatpush.msra.mxu0 0.0
    %116 = vmatpush.msra.mxu0 0.0
    %117 = vmatpush.msra.mxu0 0.0
    %118 = vmatpush.msra.mxu0 0.0
    %119 = vmatpush.msra.mxu0 0.0
    %120 = vmatpush.msra.mxu0 0.0
    %121 = vmatpush.msra.mxu0 0.0
    %122 = vmatpush.msra.mxu0 0.0
    %123 = vmatpush.msra.mxu0 0.0
    %124 = vmatpush.msra.mxu0 0.0
    %125 = vmatpush.msra.mxu0 0.0
    %126 = vmatpush.msra.mxu0 0.0
    %127 = vmatpush.msra.mxu0 %v68
    %128 = vmatpush.msra.mxu0 %v67
    %129 = vmatmul.f32.gmra.mxu0 %v108
    %v130 = vpop.f32.mrf.mxu0
    %v131 = vadd.f32 0.0, %v130
    %132 = vmatmul.f32.gmra.mxu0 %v111
    %v133 = vpop.f32.mrf.mxu0
    %v134 = vadd.f32 0.0, %v133
    %135 = vdwg.mxu0
    %v136 = vpack.c.bf16 %v131, %v131
    %v137 = vpack.c.bf16 %v134, %v134
    %138 = vst [vmem:[#allocation9] sm:$0xf] %v136
    %139 = vst [vmem:[#allocation9 + $0x4] sm:$0xf] %v137
    // Predicated region
    $region26: #{tpu_custom_call.1} parent=1 // pred_check
      _
    $region27: #{tpu_custom_call.1} parent=1 // pred_check_branch
      %141 = sbr.rel (0) target = $region29
    $region28: #{tpu_custom_call.1} parent=1 // pred_region
      %143 = vsyncadd [#allocation4], 0
      %s144 = sshll.u32 [#allocation8], 4
      %s145 = int_to_ptr.vmem [resolvable:$true] %s144
      %s146 = sshll.u32 %s3, 4
      %s147 = int_to_ptr.hbm [resolvable:$true] %s146
      %152 = dma.vmem_to_hbm [thread:$0]  %s145, 128, %s147, [#allocation4], 64, 64, 4
    $region29: #{tpu_custom_call.1} parent=1 // pred_fallthru
      _
    // Predicated region
    $region30: #{tpu_custom_call.1} parent=1 // pred_check
      _
    $region31: #{tpu_custom_call.1} parent=1 // pred_check_branch
      %154 = sbr.rel (0) target = $region33
    $region32: #{tpu_custom_call.1} parent=1 // pred_region
      %156 = vsyncadd [#allocation10], 0
      %s157 = sshll.u32 [#allocation9], 4
      %s158 = int_to_ptr.vmem [resolvable:$true] %s157
      %s159 = sshll.u32 %s4, 4
      %s160 = int_to_ptr.hbm [resolvable:$true] %s159
      %165 = dma.vmem_to_hbm [thread:$0]  %s158, 128, %s160, [#allocation10], 64, 64, 4
    $region33: #{tpu_custom_call.1} parent=1 // pred_fallthru
      _
    // Predicated region
    $region34: #{tpu_custom_call.1} parent=1 // pred_check
      _
    $region35: #{tpu_custom_call.1} parent=1 // pred_check_branch
      %167 = sbr.rel (0) target = $region37
    $region36: #{tpu_custom_call.1} parent=1 // pred_region
      %169 = dma.done [#allocation4], 128
    $region37: #{tpu_custom_call.1} parent=1 // pred_fallthru
      _
    // Predicated region
    $region38: #{tpu_custom_call.1} parent=1 // pred_check
      _
    $region39: #{tpu_custom_call.1} parent=1 // pred_check_branch
      %171 = sbr.rel (0) target = $region41
    $region40: #{tpu_custom_call.1} parent=1 // pred_region
      %173 = dma.done [#allocation10], 128
    $region41: #{tpu_custom_call.1} parent=1 // pred_fallthru
      _
    %174 = vsyncpa [#allocation3], 1
    %175 = vsyncpa [#allocation6], 1
    %176 = vsyncpa [#allocation4], 1
    %177 = vsyncpa [#allocation10], 1

</llo_original>
